<compile_context>
chip_gen: v7x
topology: tpu7x:2x2x1
jax: 0.10.0
libtpu: 0.0.40
codegen_flags: <defaults>
</compile_context>

<pallas_src>
import functools

import jax
import jax.numpy as jnp
from jax import lax
from jax.experimental import pallas as pl
from jax.experimental.pallas import tpu as pltpu

ALPHA = 0.1
GAMMA = 2.0


def _focal_loss_kernel(logits_ref, targets_ref, out_ref, acc_ref, *,
                       alpha, gamma, n_total, tile_n, num_tiles):
    # logits_ref : (TILE_N, C) in VMEM (any float dtype; upcast below)
    # targets_ref: (TILE_N, 1) int32 in VMEM
    # out_ref    : (1, 1) f32 in SMEM (final scalar, written on last step)
    # acc_ref    : (1, 1) f32 SMEM scratch (running sum across grid steps)
    i = pl.program_id(0)

    @pl.when(i == 0)
    def _():
        acc_ref[0, 0] = jnp.float32(0.0)

    x = logits_ref[...].astype(jnp.float32)           # (TILE_N, C)
    tgt = targets_ref[...]                            # (TILE_N, 1) int32
    tn, c = x.shape

    # numerically-stable log-sum-exp; reuse the shifted logits for the gather:
    #   ce = lse - x_true = log(sum(exp(x - m))) - (x_true - m)
    m = jnp.max(x, axis=-1, keepdims=True)            # (TILE_N, 1)
    xs = x - m                                        # (TILE_N, C)
    sumexp = jnp.sum(jnp.exp(xs), axis=-1, keepdims=True)
    col_ids = lax.broadcasted_iota(jnp.int32, (tn, c), 1)
    shifted_true = jnp.sum(jnp.where(col_ids == tgt, xs, 0.0),
                           axis=-1, keepdims=True)    # (TILE_N, 1)
    ce = jnp.log(sumexp) - shifted_true               # per-sample cross entropy

    # focal weighting
    pt = jnp.exp(-ce)
    d = 1.0 - pt
    if float(gamma) == int(gamma) and 0 <= int(gamma) <= 4:
        w = jnp.ones_like(d)
        for _ in range(int(gamma)):                   # multiply chain (VPU), no pow (EUP)
            w = w * d
    else:
        w = d ** jnp.float32(gamma)
    f = alpha * w * ce                                # (TILE_N, 1)

    # mask padded tail rows (only emitted when N % TILE_N != 0)
    if n_total % tile_n != 0:
        row_ids = i * tile_n + lax.broadcasted_iota(jnp.int32, (tn, 1), 0)
        f = jnp.where(row_ids < n_total, f, 0.0)

    acc_ref[0, 0] += jnp.sum(f)

    @pl.when(i == num_tiles - 1)
    def _():
        out_ref[0, 0] = acc_ref[0, 0] / jnp.float32(n_total)


def focal_loss(logits, targets, *, alpha=ALPHA, gamma=GAMMA, tile_n=None):
    """logits: (N, C) float (f32 or bf16), targets: (N,) int -> scalar f32."""
    n, c = logits.shape
    itemsize = jnp.dtype(logits.dtype).itemsize

    if tile_n is None:
        # ~4 MiB per logits buffer -> ~8 MiB double-buffered; safe on v5e/v6e/v7x.
        cap = max(8, (4 * 1024 * 1024) // max(1, c * itemsize))
        tile_n = min(1024, cap)
        tile_n = max(8, (tile_n // 8) * 8)            # multiple of 8 (f32 sublane)
    n_pad8 = ((n + 7) // 8) * 8
    tile_n = min(tile_n, n_pad8)                      # don't exceed (rounded) N
    num_tiles = pl.cdiv(n, tile_n)

    targets_2d = targets.astype(jnp.int32).reshape(n, 1)

    kernel = functools.partial(
        _focal_loss_kernel, alpha=float(alpha), gamma=float(gamma),
        n_total=n, tile_n=tile_n, num_tiles=num_tiles)

    cost = pl.CostEstimate(
        flops=6 * n * c,
        transcendentals=n * c + 3 * n,
        bytes_accessed=n * c * itemsize + n * 4 + 4,
    )

    out = pl.pallas_call(
        kernel,
        out_shape=jax.ShapeDtypeStruct((1, 1), jnp.float32),
        grid_spec=pltpu.PrefetchScalarGridSpec(
            num_scalar_prefetch=0,
            grid=(num_tiles,),
            in_specs=[
                pl.BlockSpec((tile_n, c), lambda i: (i, 0)),   # logits tile
                pl.BlockSpec((tile_n, 1), lambda i: (i, 0)),   # targets tile
            ],
            out_specs=pl.BlockSpec((1, 1), lambda i: (0, 0),
                                   memory_space=pltpu.SMEM),
            scratch_shapes=[pltpu.SMEM((1, 1), jnp.float32)],
        ),
        compiler_params=pltpu.CompilerParams(
            dimension_semantics=("arbitrary",),       # reduction axis
            vmem_limit_bytes=32 * 1024 * 1024,
        ),
        cost_estimate=cost,
    )(logits, targets_2d)
    return out[0, 0]


def focal_loss_ref(logits, targets, *, alpha=ALPHA, gamma=GAMMA):
    """Pure-JAX reference matching the PyTorch module (reduction='mean')."""
    logp = jax.nn.log_softmax(logits.astype(jnp.float32), axis=-1)
    ce = -jnp.take_along_axis(logp, targets[:, None].astype(jnp.int32), axis=-1)[:, 0]
    pt = jnp.exp(-ce)
    return jnp.mean(alpha * (1.0 - pt) ** gamma * ce)


if __name__ == "__main__":
    key = jax.random.PRNGKey(0)
    k1, k2 = jax.random.split(key)

    N, C = 8, 32  # batch of 8 samples, 32 classes
    logits = jax.random.normal(k1, (N, C), dtype=jnp.float32)
    targets = jax.random.randint(k2, (N,), 0, C, dtype=jnp.int32)

    out = focal_loss(logits, targets)
    out = jax.block_until_ready(out)

    ref = focal_loss_ref(logits, targets)
    assert jnp.allclose(out, ref, atol=1e-5, rtol=1e-5), (out, ref)
    print("KERNEL_OK")
</pallas_src>

<mosaic_0001>
module attributes {stable_mosaic.version = 11 : i64} {
  func.func @_focal_loss_kernel(%arg0: i32, %arg1: memref<8x32xf32, #tpu.memory_space<vmem>>, %arg2: memref<8x1xi32, #tpu.memory_space<vmem>>, %arg3: memref<1x1xf32, #tpu.memory_space<smem>>, %arg4: memref<1x1xf32, #tpu.memory_space<smem>>) attributes {dimension_semantics = [#tpu.dimension_semantics<arbitrary>], iteration_bounds = array<i64: 1>, scalar_prefetch = 0 : i64, scratch_operands = 1 : i64, tpu.core_type = #tpu.core_type<tc>, window_params = [{transform_indices = @transform_0, window_bounds = array<i64: 8, 32>}, {transform_indices = @transform_1, window_bounds = array<i64: 8, 1>}, {transform_indices = @transform_2, window_bounds = array<i64: 1, 1>}]} {
    %c0_i32 = arith.constant 0 : i32
    %0 = arith.cmpi eq, %arg0, %c0_i32 : i32
    %1 = arith.extui %0 : i1 to i32
    %c0_i32_0 = arith.constant 0 : i32
    %2 = arith.cmpi ne, %1, %c0_i32_0 : i32
    scf.if %2 {
      %cst_18 = arith.constant 0.000000e+00 : f32
      %c0_19 = arith.constant 0 : index
      %c0_20 = arith.constant 0 : index
      %42 = memref.load %arg4[%c0_19, %c0_20] : memref<1x1xf32, #tpu.memory_space<smem>>
      memref.store %cst_18, %arg4[%c0_19, %c0_20] : memref<1x1xf32, #tpu.memory_space<smem>>
    } else {
    }
    %c0 = arith.constant 0 : index
    %c0_1 = arith.constant 0 : index
    %3 = vector.load %arg1[%c0, %c0_1] : memref<8x32xf32, #tpu.memory_space<vmem>>, vector<8x32xf32>
    %c0_2 = arith.constant 0 : index
    %c0_3 = arith.constant 0 : index
    %4 = vector.load %arg2[%c0_2, %c0_3] : memref<8x1xi32, #tpu.memory_space<vmem>>, vector<8x1xi32>
    %cst = arith.constant dense<0xFF800000> : vector<8xf32>
    %5 = vector.multi_reduction <maximumf>, %3, %cst [1] : vector<8x32xf32> to vector<8xf32>
    %6 = vector.shape_cast %5 : vector<8xf32> to vector<8x1xf32>
    %7 = vector.broadcast %6 : vector<8x1xf32> to vector<8x32xf32>
    %8 = arith.subf %3, %7 : vector<8x32xf32>
    %9 = math.exp %8 : vector<8x32xf32>
    %cst_4 = arith.constant dense<0.000000e+00> : vector<8xf32>
    %10 = vector.multi_reduction <add>, %9, %cst_4 [1] : vector<8x32xf32> to vector<8xf32>
    %11 = vector.shape_cast %10 : vector<8xf32> to vector<8x1xf32>
    %12 = tpu.iota {dimensions = array<i32: 1>} : vector<8x32xi32>
    %13 = vector.broadcast %4 : vector<8x1xi32> to vector<8x32xi32>
    %14 = arith.cmpi eq, %12, %13 : vector<8x32xi32>
    %cst_5 = arith.constant 0.000000e+00 : f32
    %15 = vector.broadcast %cst_5 : f32 to vector<8x32xf32>
    %16 = arith.select %14, %8, %15 : vector<8x32xi1>, vector<8x32xf32>
    %cst_6 = arith.constant dense<0.000000e+00> : vector<8xf32>
    %17 = vector.multi_reduction <add>, %16, %cst_6 [1] : vector<8x32xf32> to vector<8xf32>
    %18 = vector.shape_cast %17 : vector<8xf32> to vector<8x1xf32>
    %19 = math.log %11 : vector<8x1xf32>
    %20 = arith.subf %19, %18 : vector<8x1xf32>
    %cst_7 = arith.constant 0.000000e+00 : f32
    %21 = vector.broadcast %cst_7 : f32 to vector<8x1xf32>
    %22 = arith.subf %21, %20 : vector<8x1xf32>
    %23 = math.exp %22 : vector<8x1xf32>
    %cst_8 = arith.constant 1.000000e+00 : f32
    %24 = vector.broadcast %cst_8 : f32 to vector<8x1xf32>
    %25 = arith.subf %24, %23 : vector<8x1xf32>
    %cst_9 = arith.constant 1.000000e+00 : f32
    %26 = vector.broadcast %cst_9 : f32 to vector<8x1xf32>
    %27 = arith.mulf %26, %25 : vector<8x1xf32>
    %28 = arith.mulf %27, %25 : vector<8x1xf32>
    %cst_10 = arith.constant 1.000000e-01 : f32
    %29 = vector.broadcast %cst_10 : f32 to vector<8x1xf32>
    %30 = arith.mulf %29, %28 : vector<8x1xf32>
    %31 = arith.mulf %30, %20 : vector<8x1xf32>
    %c0_11 = arith.constant 0 : index
    %c0_12 = arith.constant 0 : index
    %32 = memref.load %arg4[%c0_11, %c0_12] : memref<1x1xf32, #tpu.memory_space<smem>>
    %33 = vector.shape_cast %31 : vector<8x1xf32> to vector<1x8x1xf32>
    %cst_13 = arith.constant dense<0.000000e+00> : vector<1xf32>
    %34 = vector.multi_reduction <add>, %33, %cst_13 [1, 2] : vector<1x8x1xf32> to vector<1xf32>
    %35 = vector.shape_cast %34 : vector<1xf32> to vector<1x1x1xf32>
    %36 = vector.extract %35[0, 0, 0] : f32 from vector<1x1x1xf32>
    %37 = arith.addf %32, %36 : f32
    %c0_14 = arith.constant 0 : index
    %c0_15 = arith.constant 0 : index
    %38 = memref.load %arg4[%c0_14, %c0_15] : memref<1x1xf32, #tpu.memory_space<smem>>
    memref.store %37, %arg4[%c0_14, %c0_15] : memref<1x1xf32, #tpu.memory_space<smem>>
    %c0_i32_16 = arith.constant 0 : i32
    %39 = arith.cmpi eq, %arg0, %c0_i32_16 : i32
    %40 = arith.extui %39 : i1 to i32
    %c0_i32_17 = arith.constant 0 : i32
    %41 = arith.cmpi ne, %40, %c0_i32_17 : i32
    scf.if %41 {
      %c0_18 = arith.constant 0 : index
      %c0_19 = arith.constant 0 : index
      %42 = memref.load %arg4[%c0_18, %c0_19] : memref<1x1xf32, #tpu.memory_space<smem>>
      %cst_20 = arith.constant 8.000000e+00 : f32
      %43 = arith.divf %42, %cst_20 : f32
      %c0_21 = arith.constant 0 : index
      %c0_22 = arith.constant 0 : index
      %44 = memref.load %arg3[%c0_21, %c0_22] : memref<1x1xf32, #tpu.memory_space<smem>>
      memref.store %43, %arg3[%c0_21, %c0_22] : memref<1x1xf32, #tpu.memory_space<smem>>
    } else {
    }
    return
  }
  func.func @transform_0(%arg0: i32) -> (i32, i32) {
    %c0_i32 = arith.constant 0 : i32
    %c0_i32_0 = arith.constant 0 : i32
    return %arg0, %c0_i32 : i32, i32
  }
  func.func @transform_1(%arg0: i32) -> (i32, i32) {
    %c0_i32 = arith.constant 0 : i32
    %c0_i32_0 = arith.constant 0 : i32
    return %arg0, %c0_i32 : i32, i32
  }
  func.func @transform_2(%arg0: i32) -> (i32, i32) {
    %c0_i32 = arith.constant 0 : i32
    %c0_i32_0 = arith.constant 0 : i32
    %c0_i32_1 = arith.constant 0 : i32
    return %c0_i32, %c0_i32_0 : i32, i32
  }
}

</mosaic_0001>

<llo_original>
// kernel: tpu_custom_call.1
$region0: #{tpu_custom_call.1}
  #allocation0 [shape = 'u32[]', space=smem, size = 0x4, offset = 0x4, fixed_abs, tag = 'smem constant byte address 0x4 - core index']
  #allocation1 [shape = 'u32[144,128]{1,0:T(1,128)}', space=vmem, size = 0x12000, scoped, tag = 'internal scratch']
  #allocation2 [shape = 'f32[1,1]{1,0:T(1,128)}', space=smem, size = 0x200, scoped, tag = 'scratch operand']
  %s0 = inlined_call_operand.vmem [shape: f32[8,32], index: 0, kind: input, shape index: {}]
  %s1 = inlined_call_operand.vmem [shape: s32[8,1], index: 1, kind: input, shape index: {}]
  %s2 = inlined_call_operand.hbm [shape: f32[1,1], index: 2, kind: output, shape index: {}]
  %s3 = sld [smem:[#allocation0]]
  $region26: #{tpu_custom_call.1} parent=0
    _
  %s5 = ssub.s32 1, %s3
  %s6 = scalar_select 0, %s5, %s3
  $region1: #{tpu_custom_call.1} parent=0
    #allocation3 [shape = 'u8[512]{0}', space=smem, size = 0x200, scoped, tag = 'output window, operand 0, single buffered']
    #allocation4 [shape = 's32[1]{0}', space=sflag, size = 0x4, scoped, tag = 'scoped memory for tpu_custom_call.1']
    %7 = vsyncpa [#allocation4], 0
    // Predicated region
    $region2: #{tpu_custom_call.1} parent=1 // pred_check
      _
    $region3: #{tpu_custom_call.1} parent=1 // pred_check_branch
      %9 = sbr.rel (0) target = $region5
    $region4: #{tpu_custom_call.1} parent=1 // pred_region
      _
    $region5: #{tpu_custom_call.1} parent=1 // pred_fallthru
      _
    // Predicated region
    $region6: #{tpu_custom_call.1} parent=1 // pred_check
      _
    $region7: #{tpu_custom_call.1} parent=1 // pred_check_branch
      %11 = sbr.rel (0) target = $region9
    $region8: #{tpu_custom_call.1} parent=1 // pred_region
      _
    $region9: #{tpu_custom_call.1} parent=1 // pred_fallthru
      _
    %p12 = scmp.eq.s32.totalorder 0, 0
    // Predicated region
    $region10: #{tpu_custom_call.1} parent=1 // pred_check
      %p13 = pneg %p12
    $region11: #{tpu_custom_call.1} parent=1 // pred_check_branch
      %15 = sbr.rel (%p13) target = $region13
    $region12: #{tpu_custom_call.1} parent=1 // pred_region
      %s16 = scalar_lea.smem [#allocation2], 0
      %17 = sst [smem:[%s16]] 0.0
    $region13: #{tpu_custom_call.1} parent=1 // pred_fallthru
      _
    %v18 = vld [vmem:[%s0] sm:$0xff]
    %v19 = vld [vmem:[%s1] sm:$0xff]
    %vm20 = vcmask 261120
    %v21 = vsel %vm20, %v18, -inf
    %22 = vmax.xlane.f32.xlu0 %v21
    %v23 = vpop.xlane.xlu0 %22
    %v24 = vsub.f32 %v18, %v23
    %v25 = vmul.f32 %v24, 1.442695
    %v26 = vpow.pop %v25
    %v27 = vsel %vm20, %v26, 0.0
    %28 = vadd.xlane.f32.xlu0 %v27
    %v29 = vpop.xlane.xlu0 %28
    %v30 = vlaneseq
    %v31 = vand.u32 %v30, 127
    %32 = vset.pattern.permute.xlu0 0
    %33 = vperm.xlu0 %32, %v19
    %v34 = vpop.permute.xlu0 %33
    %vm35 = vcmp.eq.s32.totalorder %v31, %v34
    %v36 = vsel %vm35, %v24, 0.0
    %v37 = vsel %vm20, %v36, 0.0
    %38 = vadd.xlane.f32.xlu0 %v37
    %v39 = vpop.xlane.xlu0 %38
    %v40 = vlog2.pop %v29
    %v41 = vmul.f32 %v40, 0.6931472
    %v42 = vsub.f32 %v41, %v39
    %v43 = vsub.f32 0.0, %v42
    %v44 = vmul.f32 %v43, 1.442695
    %v45 = vpow.pop %v44
    %v46 = vsub.f32 1.0, %v45
    %v47 = vmul.f32 %v46, %v46
    %v48 = vmul.f32 %v47, 0.1
    %v49 = vmul.f32 %v48, %v42
    %s50 = sld [smem:[#allocation2]]
    %vm51 = vcmask 7168
    %v52 = vsel %vm51, %v49, 0.0
    %53 = vadd.xlane.f32.xlu0 %v52
    %v54 = vpop.xlane.xlu0 %53
    %v55 = vrot.slane %v54, 4
    %v56 = vadd.f32 %v54, %v55
    %v57 = vrot.slane %v56, 2
    %v58 = vadd.f32 %v56, %v57
    %v59 = vrot.slane %v58, 1
    %v60 = vadd.f32 %v58, %v59
    %s61 = vtos %v60
    %s62 = sadd.f32 %s50, %s61
    %s63 = scalar_lea.smem [#allocation2], 0
    %64 = sst [smem:[%s63]] %s62
    // Predicated region
    $region14: #{tpu_custom_call.1} parent=1 // pred_check
      %p65 = pneg %p12
    $region15: #{tpu_custom_call.1} parent=1 // pred_check_branch
      %67 = sbr.rel (%p65) target = $region17
    $region16: #{tpu_custom_call.1} parent=1 // pred_region
      %s68 = sld [smem:[#allocation2]]
      %v69 = vrcp.pop 8.0
      %s70 = vtos %v69
      %s71 = smul.f32 %s68, %s70
      %s72 = scalar_lea.smem [#allocation3], 0
      %73 = sst [smem:[%s72]] %s71
    $region17: #{tpu_custom_call.1} parent=1 // pred_fallthru
      _
    // Predicated region
    $region18: #{tpu_custom_call.1} parent=1 // pred_check
      _
    $region19: #{tpu_custom_call.1} parent=1 // pred_check_branch
      %75 = sbr.rel (0) target = $region21
    $region20: #{tpu_custom_call.1} parent=1 // pred_region
      %s77 = ssub.s32 16, 16
      %78 = vsyncadd [#allocation4], %s77
      %81 = dma.smem_to_hbm [#allocation3], 16, %s2, [#allocation4]
    $region21: #{tpu_custom_call.1} parent=1 // pred_fallthru
      _
    // Predicated region
    $region22: #{tpu_custom_call.1} parent=1 // pred_check
      _
    $region23: #{tpu_custom_call.1} parent=1 // pred_check_branch
      %83 = sbr.rel (0) target = $region25
    $region24: #{tpu_custom_call.1} parent=1 // pred_region
      %84 = dma.done [#allocation4], 16
    $region25: #{tpu_custom_call.1} parent=1 // pred_fallthru
      _
    %85 = sfence
    %86 = vsyncpa [#allocation4], 1

</llo_original>
